<compile_context>
chip_gen: v6e
topology: v6e:2x2x1
jax: 0.10.0
libtpu: 0.0.40
codegen_flags: <defaults>
</compile_context>

<pallas_src>
import functools
import math

import jax
import jax.numpy as jnp
from jax import lax
from jax.experimental import pallas as pl
from jax.experimental.pallas import tpu as pltpu

CLASSES = 32
SMOOTHING = 0.1
CONFIDENCE = 1.0 - SMOOTHING


def _round_up(x, m):
    return (x + m - 1) // m * m


def _label_smoothing_kernel(pred_ref, labels_ref, out_ref, *, batch, classes,
                            block_rows, h_row, w_all, w_lab):
    step = pl.program_id(0)

    pred = pred_ref[...].astype(jnp.float32)          # [block_rows, C]
    labels = labels_ref[...]                          # [block_rows, 1] int32

    # Numerically stable log_softmax along the class (lane) axis.
    m = jnp.max(pred, axis=-1, keepdims=True)
    shifted = pred - m
    lse = jnp.log(jnp.sum(jnp.exp(shifted), axis=-1, keepdims=True))
    logp = shifted - lse                              # [block_rows, C]

    # sum_c true_dist*logp = base*sum_c(logp) + (conf-base)*logp[label]
    cols = lax.broadcasted_iota(jnp.int32, (block_rows, classes), 1)
    at_label = cols == labels                         # [block_rows, C]
    row_all = jnp.sum(logp, axis=-1, keepdims=True)                        # [bR,1]
    row_lab = jnp.sum(jnp.where(at_label, logp, 0.0), axis=-1, keepdims=True)

    # Mask rows past the true batch size (ragged tail block). jnp.where is a
    # select, so garbage/NaN in padded rows cannot leak into the sum.
    rows = step * block_rows + lax.broadcasted_iota(jnp.int32, (block_rows, 1), 0)
    contrib = jnp.where(rows < batch, w_all * row_all + w_lab * row_lab, 0.0)
    partial = jnp.sum(contrib)                        # scalar

    # Scalar accumulator lives in the SMEM output across grid steps.
    @pl.when(step == 0)
    def _():
        out_ref[0, 0] = jnp.float32(h_row)            # sum(t*log t)/B, precomputed

    out_ref[0, 0] = out_ref[0, 0] - partial


def label_smoothing_loss(prediction, true_labels, *, block_rows=None):
    """prediction: [B, CLASSES] float (f32 or bf16); true_labels: reshapeable to [B, 1]."""
    B, C = prediction.shape
    if C != CLASSES:
        raise ValueError(
            f"Mismatch between prediction and specified class number, "
            f"have pre-specified classes equal to {CLASSES} while {C} in prediction"
        )
    labels = true_labels.reshape(B, 1).astype(jnp.int32)

    # Row-block tiling: stream the batch through a pipelined reduce. At B=8
    # this is a single grid step.
    if block_rows is None:
        block_rows = 512
    block_rows = max(8, _round_up(min(block_rows, _round_up(B, 8)), 8))
    grid = (pl.cdiv(B, block_rows),)

    # Compile-time constants: per-row entropy-like term and 1/B folded into
    # the reduction weights.
    base = SMOOTHING / (C - 1)
    h_row = base * math.log(base) * (C - 1) + CONFIDENCE * math.log(CONFIDENCE)
    inv_b = 1.0 / B
    kernel = functools.partial(
        _label_smoothing_kernel,
        batch=B, classes=C, block_rows=block_rows,
        h_row=h_row, w_all=base * inv_b, w_lab=(CONFIDENCE - base) * inv_b)

    out = pl.pallas_call(
        kernel,
        out_shape=jax.ShapeDtypeStruct((1, 1), jnp.float32),
        grid=grid,
        in_specs=[
            pl.BlockSpec((block_rows, C), lambda i: (i, 0)),
            pl.BlockSpec((block_rows, 1), lambda i: (i, 0)),
        ],
        out_specs=pl.BlockSpec(memory_space=pltpu.MemorySpace.SMEM),
        # The batch axis accumulates into a shared SMEM scalar -> "arbitrary".
        # TODO(synk): per-core partial sums would allow "parallel" on v7x.
        compiler_params=pltpu.CompilerParams(dimension_semantics=("arbitrary",)),
    )(prediction, labels)
    return out[0, 0]


def _reference_loss(prediction, true_labels):
    B, C = prediction.shape
    labels = true_labels.reshape(B)
    logp = jax.nn.log_softmax(prediction.astype(jnp.float32), axis=-1)
    base = SMOOTHING / (C - 1)
    true_dist = jnp.full((B, C), base, dtype=jnp.float32)
    true_dist = true_dist.at[jnp.arange(B), labels].set(CONFIDENCE)
    return jnp.sum(true_dist * (jnp.log(true_dist) - logp)) / B


if __name__ == "__main__":
    key = jax.random.PRNGKey(0)
    k_pred, k_lab = jax.random.split(key)
    B = 8
    prediction = jax.random.normal(k_pred, (B, CLASSES), dtype=jnp.float32)
    true_labels = jax.random.randint(k_lab, (B, 1), 0, CLASSES, dtype=jnp.int32)

    loss = label_smoothing_loss(prediction, true_labels)
    jax.block_until_ready(loss)

    ref = _reference_loss(prediction, true_labels)
    assert jnp.allclose(loss, ref, atol=1e-5, rtol=1e-5), (loss, ref)

    print("KERNEL_OK")
</pallas_src>

<mosaic_0001>
module attributes {stable_mosaic.version = 11 : i64} {
  func.func @_label_smoothing_kernel(%arg0: i32, %arg1: memref<8x32xf32, #tpu.memory_space<vmem>>, %arg2: memref<8x1xi32, #tpu.memory_space<vmem>>, %arg3: memref<1x1xf32, #tpu.memory_space<smem>>) attributes {dimension_semantics = [#tpu.dimension_semantics<arbitrary>], iteration_bounds = array<i64: 1>, scalar_prefetch = 0 : i64, scratch_operands = 0 : i64, tpu.core_type = #tpu.core_type<tc>, window_params = [{transform_indices = @transform_0, window_bounds = array<i64: 8, 32>}, {transform_indices = @transform_1, window_bounds = array<i64: 8, 1>}, {transform_indices = @transform_2, window_bounds = array<i64: 1, 1>}]} {
    %c0 = arith.constant 0 : index
    %c0_0 = arith.constant 0 : index
    %0 = vector.load %arg1[%c0, %c0_0] : memref<8x32xf32, #tpu.memory_space<vmem>>, vector<8x32xf32>
    %c0_1 = arith.constant 0 : index
    %c0_2 = arith.constant 0 : index
    %1 = vector.load %arg2[%c0_1, %c0_2] : memref<8x1xi32, #tpu.memory_space<vmem>>, vector<8x1xi32>
    %cst = arith.constant dense<0xFF800000> : vector<8xf32>
    %2 = vector.multi_reduction <maximumf>, %0, %cst [1] : vector<8x32xf32> to vector<8xf32>
    %3 = vector.shape_cast %2 : vector<8xf32> to vector<8x1xf32>
    %4 = vector.broadcast %3 : vector<8x1xf32> to vector<8x32xf32>
    %5 = arith.subf %0, %4 : vector<8x32xf32>
    %6 = math.exp %5 : vector<8x32xf32>
    %cst_3 = arith.constant dense<0.000000e+00> : vector<8xf32>
    %7 = vector.multi_reduction <add>, %6, %cst_3 [1] : vector<8x32xf32> to vector<8xf32>
    %8 = vector.shape_cast %7 : vector<8xf32> to vector<8x1xf32>
    %9 = math.log %8 : vector<8x1xf32>
    %10 = vector.broadcast %9 : vector<8x1xf32> to vector<8x32xf32>
    %11 = arith.subf %5, %10 : vector<8x32xf32>
    %12 = tpu.iota {dimensions = array<i32: 1>} : vector<8x32xi32>
    %13 = vector.broadcast %1 : vector<8x1xi32> to vector<8x32xi32>
    %14 = arith.cmpi eq, %12, %13 : vector<8x32xi32>
    %cst_4 = arith.constant dense<0.000000e+00> : vector<8xf32>
    %15 = vector.multi_reduction <add>, %11, %cst_4 [1] : vector<8x32xf32> to vector<8xf32>
    %16 = vector.shape_cast %15 : vector<8xf32> to vector<8x1xf32>
    %cst_5 = arith.constant 0.000000e+00 : f32
    %17 = vector.broadcast %cst_5 : f32 to vector<8x32xf32>
    %18 = arith.select %14, %11, %17 : vector<8x32xi1>, vector<8x32xf32>
    %cst_6 = arith.constant dense<0.000000e+00> : vector<8xf32>
    %19 = vector.multi_reduction <add>, %18, %cst_6 [1] : vector<8x32xf32> to vector<8xf32>
    %20 = vector.shape_cast %19 : vector<8xf32> to vector<8x1xf32>
    %c8_i32 = arith.constant 8 : i32
    %21 = arith.muli %arg0, %c8_i32 : i32
    %22 = tpu.iota {dimensions = array<i32: 0>} : vector<8x1xi32>
    %23 = vector.broadcast %21 : i32 to vector<8x1xi32>
    %24 = arith.addi %23, %22 : vector<8x1xi32>
    %c8_i32_7 = arith.constant 8 : i32
    %25 = vector.broadcast %c8_i32_7 : i32 to vector<8x1xi32>
    %26 = arith.cmpi slt, %24, %25 : vector<8x1xi32>
    %cst_8 = arith.constant 4.032258E-4 : f32
    %27 = vector.broadcast %cst_8 : f32 to vector<8x1xf32>
    %28 = arith.mulf %27, %16 : vector<8x1xf32>
    %cst_9 = arith.constant 0.112096772 : f32
    %29 = vector.broadcast %cst_9 : f32 to vector<8x1xf32>
    %30 = arith.mulf %29, %20 : vector<8x1xf32>
    %31 = arith.addf %28, %30 : vector<8x1xf32>
    %cst_10 = arith.constant 0.000000e+00 : f32
    %32 = vector.broadcast %cst_10 : f32 to vector<8x1xf32>
    %33 = arith.select %26, %31, %32 : vector<8x1xi1>, vector<8x1xf32>
    %34 = vector.shape_cast %33 : vector<8x1xf32> to vector<1x8x1xf32>
    %cst_11 = arith.constant dense<0.000000e+00> : vector<1xf32>
    %35 = vector.multi_reduction <add>, %34, %cst_11 [1, 2] : vector<1x8x1xf32> to vector<1xf32>
    %36 = vector.shape_cast %35 : vector<1xf32> to vector<1x1x1xf32>
    %37 = vector.extract %36[0, 0, 0] : f32 from vector<1x1x1xf32>
    %c0_i32 = arith.constant 0 : i32
    %38 = arith.cmpi eq, %arg0, %c0_i32 : i32
    %39 = arith.extui %38 : i1 to i32
    %c0_i32_12 = arith.constant 0 : i32
    %40 = arith.cmpi ne, %39, %c0_i32_12 : i32
    scf.if %40 {
      %cst_17 = arith.constant -0.668481708 : f32
      %c0_18 = arith.constant 0 : index
      %c0_19 = arith.constant 0 : index
      %44 = memref.load %arg3[%c0_18, %c0_19] : memref<1x1xf32, #tpu.memory_space<smem>>
      memref.store %cst_17, %arg3[%c0_18, %c0_19] : memref<1x1xf32, #tpu.memory_space<smem>>
    } else {
    }
    %c0_13 = arith.constant 0 : index
    %c0_14 = arith.constant 0 : index
    %41 = memref.load %arg3[%c0_13, %c0_14] : memref<1x1xf32, #tpu.memory_space<smem>>
    %42 = arith.subf %41, %37 : f32
    %c0_15 = arith.constant 0 : index
    %c0_16 = arith.constant 0 : index
    %43 = memref.load %arg3[%c0_15, %c0_16] : memref<1x1xf32, #tpu.memory_space<smem>>
    memref.store %42, %arg3[%c0_15, %c0_16] : memref<1x1xf32, #tpu.memory_space<smem>>
    return
  }
  func.func @transform_0(%arg0: i32) -> (i32, i32) {
    %c0_i32 = arith.constant 0 : i32
    %c0_i32_0 = arith.constant 0 : i32
    return %arg0, %c0_i32 : i32, i32
  }
  func.func @transform_1(%arg0: i32) -> (i32, i32) {
    %c0_i32 = arith.constant 0 : i32
    %c0_i32_0 = arith.constant 0 : i32
    return %arg0, %c0_i32 : i32, i32
  }
  func.func @transform_2(%arg0: i32) -> (i32, i32) {
    %c0_i32 = arith.constant 0 : i32
    %c0_i32_0 = arith.constant 0 : i32
    %c0_i32_1 = arith.constant 0 : i32
    return %c0_i32, %c0_i32_0 : i32, i32
  }
}

</mosaic_0001>

<llo_original>
// kernel: tpu_custom_call.1
$region0: #{tpu_custom_call.1}
  #allocation0 [shape = 'u32[]', space=smem, size = 0x4, offset = 0x4, fixed_abs, tag = 'smem constant byte address 0x4 - core index']
  #allocation1 [shape = 'u32[144,128]{1,0:T(1,128)}', space=vmem, size = 0x12000, scoped, tag = 'internal scratch']
  %s0 = inlined_call_operand.vmem [shape: f32[8,32], index: 0, kind: input, shape index: {}]
  %s1 = inlined_call_operand.vmem [shape: s32[8,1], index: 1, kind: input, shape index: {}]
  %s2 = inlined_call_operand.hbm [shape: f32[1,1], index: 2, kind: output, shape index: {}]
  %s3 = sld [smem:[#allocation0]]
  $region22: #{tpu_custom_call.1} parent=0
    _
  %s5 = ssub.s32 1, %s3
  %s6 = scalar_select 0, %s5, %s3
  $region1: #{tpu_custom_call.1} parent=0
    #allocation2 [shape = 'u8[512]{0}', space=smem, size = 0x200, scoped, tag = 'output window, operand 0, single buffered']
    #allocation3 [shape = 's32[1]{0}', space=sflag, size = 0x4, scoped, tag = 'scoped memory for tpu_custom_call.1']
    %7 = vsyncpa [#allocation3], 0
    // Predicated region
    $region2: #{tpu_custom_call.1} parent=1 // pred_check
      _
    $region3: #{tpu_custom_call.1} parent=1 // pred_check_branch
      %9 = sbr.rel (0) target = $region5
    $region4: #{tpu_custom_call.1} parent=1 // pred_region
      _
    $region5: #{tpu_custom_call.1} parent=1 // pred_fallthru
      _
    // Predicated region
    $region6: #{tpu_custom_call.1} parent=1 // pred_check
      _
    $region7: #{tpu_custom_call.1} parent=1 // pred_check_branch
      %11 = sbr.rel (0) target = $region9
    $region8: #{tpu_custom_call.1} parent=1 // pred_region
      _
    $region9: #{tpu_custom_call.1} parent=1 // pred_fallthru
      _
    %v12 = vld [vmem:[%s0] sm:$0xff]
    %v13 = vld [vmem:[%s1] sm:$0xff]
    %vm14 = vcmask 261120
    %v15 = vsel %vm14, %v12, -inf
    %16 = vmax.xlane.f32.xlu0 %v15
    %v17 = vpop.xlane.xlu0 %16
    %v18 = vsub.f32 %v12, %v17
    %v19 = vmul.f32 %v18, 1.442695
    %v20 = vpow.pop %v19
    %v21 = vsel %vm14, %v20, 0.0
    %22 = vadd.xlane.f32.xlu0 %v21
    %v23 = vpop.xlane.xlu0 %22
    %v24 = vlog2.pop %v23
    %v25 = vmul.f32 %v24, 0.6931472
    %v26 = vsub.f32 %v18, %v25
    %v27 = vlaneseq
    %v28 = vand.u32 %v27, 127
    %29 = vset.pattern.permute.xlu0 0
    %30 = vperm.xlu0 %29, %v13
    %v31 = vpop.permute.xlu0 %30
    %vm32 = vcmp.eq.s32.totalorder %v28, %v31
    %v33 = vsel %vm14, %v26, 0.0
    %34 = vadd.xlane.f32.xlu0 %v33
    %v35 = vpop.xlane.xlu0 %34
    %v36 = vsel %vm32, %v26, 0.0
    %v37 = vsel %vm14, %v36, 0.0
    %38 = vadd.xlane.f32.xlu0 %v37
    %v39 = vpop.xlane.xlu0 %38
    %s40 = smul.u32 0, 8
    %v41 = vlaneseq
    %v42 = vshrl.u32 %v41, 7
    %v43 = vstv %s40
    %v44 = vadd.s32 %v43, %v42
    %vm45 = vcmp.lt.s32.totalorder %v44, 8
    %v46 = vmul.f32 %v35, 0.0004032258
    %v47 = vmul.f32 %v39, 0.11209677
    %v48 = vadd.f32 %v46, %v47
    %v49 = vsel %vm45, %v48, 0.0
    %vm50 = vcmask 7168
    %v51 = vsel %vm50, %v49, 0.0
    %52 = vadd.xlane.f32.xlu0 %v51
    %v53 = vpop.xlane.xlu0 %52
    %v54 = vrot.slane %v53, 4
    %v55 = vadd.f32 %v53, %v54
    %v56 = vrot.slane %v55, 2
    %v57 = vadd.f32 %v55, %v56
    %v58 = vrot.slane %v57, 1
    %v59 = vadd.f32 %v57, %v58
    %s60 = vtos %v59
    %p61 = scmp.eq.s32.totalorder 0, 0
    // Predicated region
    $region10: #{tpu_custom_call.1} parent=1 // pred_check
      %p62 = pneg %p61
    $region11: #{tpu_custom_call.1} parent=1 // pred_check_branch
      %64 = sbr.rel (%p62) target = $region13
    $region12: #{tpu_custom_call.1} parent=1 // pred_region
      %s65 = scalar_lea.smem [#allocation2], 0
      %66 = sst [smem:[%s65]] -0.6684817
    $region13: #{tpu_custom_call.1} parent=1 // pred_fallthru
      _
    %s67 = sld [smem:[#allocation2]]
    %s68 = ssub.f32 %s67, %s60
    %s69 = scalar_lea.smem [#allocation2], 0
    %70 = sst [smem:[%s69]] %s68
    // Predicated region
    $region14: #{tpu_custom_call.1} parent=1 // pred_check
      _
    $region15: #{tpu_custom_call.1} parent=1 // pred_check_branch
      %72 = sbr.rel (0) target = $region17
    $region16: #{tpu_custom_call.1} parent=1 // pred_region
      %s74 = ssub.s32 16, 16
      %75 = vsyncadd [#allocation3], %s74
      %78 = dma.smem_to_hbm [#allocation2], 16, %s2, [#allocation3]
    $region17: #{tpu_custom_call.1} parent=1 // pred_fallthru
      _
    // Predicated region
    $region18: #{tpu_custom_call.1} parent=1 // pred_check
      _
    $region19: #{tpu_custom_call.1} parent=1 // pred_check_branch
      %80 = sbr.rel (0) target = $region21
    $region20: #{tpu_custom_call.1} parent=1 // pred_region
      %81 = dma.done [#allocation3], 16
    $region21: #{tpu_custom_call.1} parent=1 // pred_fallthru
      _
    %82 = sfence
    %83 = vsyncpa [#allocation3], 1

</llo_original>
